<compile_context>
chip_gen: v7x
topology: tpu7x:2x2x1
jax: 0.10.0
libtpu: 0.0.40
codegen_flags: <defaults>
</compile_context>

<pallas_src>
import jax
import jax.numpy as jnp
from jax import lax
from jax.experimental import pallas as pl
from jax.experimental.pallas import tpu as pltpu


_VMEM_LIMIT_BYTES = 32 * 1024 * 1024  # safe on v5e / v6e / v7x; ample for these shapes


# ---------------------------------------------------------------------------
# Kernel 1: batched input projection for all time steps
#   gates_x[t*B + b, :] = x[t, b, :] @ W_ih^T + (b_ih + b_hh)
# ---------------------------------------------------------------------------
def _input_proj_kernel(x_ref, wih_ref, b_ref, gx_ref):
    gx_ref[...] = (
        jnp.dot(x_ref[...], wih_ref[...], preferred_element_type=jnp.float32)
        + b_ref[...]
    )


# ---------------------------------------------------------------------------
# Kernel 2: sequential LSTM recurrence, T_CHUNK steps per grid iteration.
#   Only the h @ W_hh^T matmul runs per step; x-projection is precomputed.
# ---------------------------------------------------------------------------
def _lstm_recurrence_kernel(gx_ref, whh_ref, h0_ref, c0_ref,
                            out_ref, hn_ref, cn_ref, h_sc, c_sc):
    H = h_sc.shape[-1]
    t_chunk = gx_ref.shape[0]

    @pl.when(pl.program_id(0) == 0)
    def _():
        h_sc[...] = h0_ref[...]
        c_sc[...] = c0_ref[...]

    def step(i, carry):
        # Recurrent matmul on the MXU: bf16 operands, f32 accumulation.
        h_bf = h_sc[...].astype(jnp.bfloat16)
        gates = gx_ref[i] + jnp.dot(
            h_bf, whh_ref[...], preferred_element_type=jnp.float32
        )                                               # (B, 4H) f32
        # PyTorch gate order: i, f, g, o.  With H % 128 == 0 these slices are
        # lane-aligned (free VPU selects, unmasked stores).
        i_g = jax.nn.sigmoid(gates[:, 0 * H:1 * H])
        f_g = jax.nn.sigmoid(gates[:, 1 * H:2 * H])
        g_g = jnp.tanh(gates[:, 2 * H:3 * H])
        o_g = jax.nn.sigmoid(gates[:, 3 * H:4 * H])

        c_new = f_g * c_sc[...] + i_g * g_g
        h_new = o_g * jnp.tanh(c_new)

        c_sc[...] = c_new
        h_sc[...] = h_new
        out_ref[i] = h_new.astype(out_ref.dtype)
        return carry

    lax.fori_loop(0, t_chunk, step, 0, unroll=True)

    # Output blocks with a constant index_map stay resident in VMEM across the
    # (sequential) grid; this only hits HBM once, after the last chunk.
    hn_ref[...] = h_sc[...]
    cn_ref[...] = c_sc[...]


def _pick_time_chunk(T, cap=16):
    """Largest divisor of T that is <= cap (amortizes per-grid-step overhead)."""
    for c in range(min(cap, T), 0, -1):
        if T % c == 0:
            return c
    return 1


def lstm_pallas(x_tbh, w_ih, w_hh, b_ih, b_hh, h0, c0):
    """x_tbh: (T, B, H); w_ih/w_hh: (4H, H); b_*: (4H,); h0/c0: (B, H)."""
    T, B, H = x_tbh.shape

    # bf16 matmul operands (MXU-friendly), f32 bias / accumulation.
    wih_t = jnp.transpose(w_ih).astype(jnp.bfloat16)            # (H, 4H)
    whh_t = jnp.transpose(w_hh).astype(jnp.bfloat16)            # (H, 4H)
    bias = (b_ih + b_hh).astype(jnp.float32).reshape(1, 4 * H)  # folded once
    x2d = x_tbh.reshape(T * B, H).astype(jnp.bfloat16)          # (T*B, H)

    # ---- 1) One big GEMM for the input projection over all time steps -----
    gates_x_2d = pl.pallas_call(
        _input_proj_kernel,
        out_shape=jax.ShapeDtypeStruct((T * B, 4 * H), jnp.float32),
        grid=(1,),
        in_specs=[
            pl.BlockSpec((T * B, H), lambda i: (0, 0)),
            pl.BlockSpec((H, 4 * H), lambda i: (0, 0)),
            pl.BlockSpec((1, 4 * H), lambda i: (0, 0)),
        ],
        out_specs=pl.BlockSpec((T * B, 4 * H), lambda i: (0, 0)),
        compiler_params=pltpu.CompilerParams(
            dimension_semantics=("arbitrary",),
            vmem_limit_bytes=_VMEM_LIMIT_BYTES),
    )(x2d, wih_t, bias)
    gates_x = gates_x_2d.reshape(T, B, 4 * H)                   # row-major: free

    # ---- 2) Sequential recurrence, chunked over time -----------------------
    t_chunk = _pick_time_chunk(T)
    num_chunks = T // t_chunk

    out, h_n, c_n = pl.pallas_call(
        _lstm_recurrence_kernel,
        out_shape=(
            jax.ShapeDtypeStruct((T, B, H), jnp.float32),
            jax.ShapeDtypeStruct((B, H), jnp.float32),
            jax.ShapeDtypeStruct((B, H), jnp.float32),
        ),
        grid=(num_chunks,),
        in_specs=[
            pl.BlockSpec((t_chunk, B, 4 * H), lambda t: (t, 0, 0)),  # gates_x
            pl.BlockSpec((H, 4 * H), lambda t: (0, 0)),              # W_hh^T (bf16)
            pl.BlockSpec((B, H), lambda t: (0, 0)),                  # h0
            pl.BlockSpec((B, H), lambda t: (0, 0)),                  # c0
        ],
        out_specs=[
            pl.BlockSpec((t_chunk, B, H), lambda t: (t, 0, 0)),      # output seq
            pl.BlockSpec((B, H), lambda t: (0, 0)),                  # h_n
            pl.BlockSpec((B, H), lambda t: (0, 0)),                  # c_n
        ],
        scratch_shapes=[
            pltpu.VMEM((B, H), jnp.float32),                         # h state
            pltpu.VMEM((B, H), jnp.float32),                         # c state
        ],
        compiler_params=pltpu.CompilerParams(
            dimension_semantics=("arbitrary",),                      # serial in T
            vmem_limit_bytes=_VMEM_LIMIT_BYTES),
    )(gates_x, whh_t, h0.astype(jnp.float32), c0.astype(jnp.float32))
    return out, h_n, c_n


class EncoderRNNPallas:
    """Pallas equivalent of the PyTorch EncoderRNN forward pass."""

    def __init__(self, input_size, hidden_size, key):
        self.hidden_size = hidden_size
        k = jax.random.split(key, 5)
        bound = 1.0 / jnp.sqrt(hidden_size)
        # nn.Embedding default init: N(0, 1)
        self.embedding = jax.random.normal(
            k[0], (input_size, hidden_size), dtype=jnp.float32)
        # nn.LSTM default init: U(-1/sqrt(H), 1/sqrt(H))
        self.w_ih = jax.random.uniform(
            k[1], (4 * hidden_size, hidden_size), jnp.float32, -bound, bound)
        self.w_hh = jax.random.uniform(
            k[2], (4 * hidden_size, hidden_size), jnp.float32, -bound, bound)
        self.b_ih = jax.random.uniform(
            k[3], (4 * hidden_size,), jnp.float32, -bound, bound)
        self.b_hh = jax.random.uniform(
            k[4], (4 * hidden_size,), jnp.float32, -bound, bound)

    def init_hidden(self, sample_num):
        h = jnp.zeros((1, sample_num, self.hidden_size), jnp.float32)
        c = jnp.zeros((1, sample_num, self.hidden_size), jnp.float32)
        return (h, c)

    def forward(self, input_ids, hidden):
        # input_ids: (B, T) int32 token indices; hidden: ((1,B,H), (1,B,H))
        h0, c0 = hidden
        # Gather the embedding directly in seq-major (T, B, H) order — no
        # separate (B, T, H) materialization + transpose.
        # TODO(synk): the gather itself could be fused into the projection
        # kernel via PrefetchScalarGridSpec + pl.Element row-gather.
        x_tbh = jnp.take(self.embedding, input_ids.T, axis=0)   # (T, B, H)
        out, h_n, c_n = lstm_pallas(
            x_tbh, self.w_ih, self.w_hh, self.b_ih, self.b_hh,
            h0[0], c0[0])
        return out, (h_n[None], c_n[None])


def _reference_forward(enc, input_ids, hidden):
    """Pure-JAX f32 reference (lax.scan LSTM) for validation."""
    h0, c0 = hidden
    embedded = jnp.take(enc.embedding, input_ids, axis=0)
    x_tbh = jnp.transpose(embedded, (1, 0, 2))
    H = enc.hidden_size
    b = enc.b_ih + enc.b_hh

    def step(carry, x_t):
        h, c = carry
        gates = x_t @ enc.w_ih.T + h @ enc.w_hh.T + b
        i = jax.nn.sigmoid(gates[:, 0 * H:1 * H])
        f = jax.nn.sigmoid(gates[:, 1 * H:2 * H])
        g = jnp.tanh(gates[:, 2 * H:3 * H])
        o = jax.nn.sigmoid(gates[:, 3 * H:4 * H])
        c_new = f * c + i * g
        h_new = o * jnp.tanh(c_new)
        return (h_new, c_new), h_new

    (h_n, c_n), out = lax.scan(step, (h0[0], c0[0]), x_tbh)
    return out, (h_n[None], c_n[None])


if __name__ == "__main__":
    key = jax.random.PRNGKey(0)
    k_param, k_data = jax.random.split(key)

    input_size = 50       # vocab
    hidden_size = 256     # matches the spec; multiple of 128 -> lane-aligned gates
    batch = 2
    seq_len = 8

    enc = EncoderRNNPallas(input_size, hidden_size, k_param)
    input_ids = jax.random.randint(k_data, (batch, seq_len), 0, input_size,
                                   dtype=jnp.int32)
    hidden = enc.init_hidden(batch)

    out, (h_n, c_n) = enc.forward(input_ids, hidden)
    out = jax.block_until_ready(out)
    h_n = jax.block_until_ready(h_n)
    c_n = jax.block_until_ready(c_n)

    assert out.shape == (seq_len, batch, hidden_size)
    assert h_n.shape == (1, batch, hidden_size)
    assert c_n.shape == (1, batch, hidden_size)

    # Validate against the pure-f32 reference (bf16 matmul operands => looser tol).
    ref_out, (ref_h, ref_c) = _reference_forward(enc, input_ids, hidden)
    assert jnp.allclose(out, ref_out, atol=2e-2, rtol=2e-2)
    assert jnp.allclose(h_n, ref_h, atol=2e-2, rtol=2e-2)
    assert jnp.allclose(c_n, ref_c, atol=2e-2, rtol=2e-2)

    print("KERNEL_OK")
</pallas_src>

<mosaic_0001>
module attributes {stable_mosaic.version = 11 : i64} {
  func.func @_input_proj_kernel(%arg0: i32, %arg1: memref<16x256xbf16, #tpu.memory_space<vmem>>, %arg2: memref<256x1024xbf16, #tpu.memory_space<vmem>>, %arg3: memref<1x1024xf32, #tpu.memory_space<vmem>>, %arg4: memref<16x1024xf32, #tpu.memory_space<vmem>>) attributes {dimension_semantics = [#tpu.dimension_semantics<arbitrary>], iteration_bounds = array<i64: 1>, scalar_prefetch = 0 : i64, scratch_operands = 0 : i64, tpu.core_type = #tpu.core_type<tc>, window_params = [{pipeline_mode = #tpu.pipeline_mode<synchronous>, transform_indices = @transform_0, window_bounds = array<i64: 16, 256>}, {pipeline_mode = #tpu.pipeline_mode<synchronous>, transform_indices = @transform_1, window_bounds = array<i64: 256, 1024>}, {pipeline_mode = #tpu.pipeline_mode<synchronous>, transform_indices = @transform_2, window_bounds = array<i64: 1, 1024>}, {pipeline_mode = #tpu.pipeline_mode<synchronous>, transform_indices = @transform_3, window_bounds = array<i64: 16, 1024>}]} {
    %c0 = arith.constant 0 : index
    %c0_0 = arith.constant 0 : index
    %0 = vector.load %arg1[%c0, %c0_0] : memref<16x256xbf16, #tpu.memory_space<vmem>>, vector<16x256xbf16>
    %c0_1 = arith.constant 0 : index
    %c0_2 = arith.constant 0 : index
    %1 = vector.load %arg2[%c0_1, %c0_2] : memref<256x1024xbf16, #tpu.memory_space<vmem>>, vector<256x1024xbf16>
    %cst = arith.constant dense<0.000000e+00> : vector<16x1024xf32>
    %2 = tpu.matmul %0, %1, %cst {dimension_numbers = #tpu.dot_dimension_numbers<[1], [0], [0], [1], [0, 0, 1, 1], [], []>} : vector<16x256xbf16>, vector<256x1024xbf16>, vector<16x1024xf32> -> vector<16x1024xf32>
    %c0_3 = arith.constant 0 : index
    %c0_4 = arith.constant 0 : index
    %3 = vector.load %arg3[%c0_3, %c0_4] : memref<1x1024xf32, #tpu.memory_space<vmem>>, vector<1x1024xf32>
    %4 = vector.broadcast %3 : vector<1x1024xf32> to vector<16x1024xf32>
    %5 = arith.addf %2, %4 : vector<16x1024xf32>
    %c0_5 = arith.constant 0 : index
    %c0_6 = arith.constant 0 : index
    %6 = vector.load %arg4[%c0_5, %c0_6] : memref<16x1024xf32, #tpu.memory_space<vmem>>, vector<16x1024xf32>
    tpu.vector_store %arg4[%c0_5, %c0_6], %5 {strides = array<i32>} : memref<16x1024xf32, #tpu.memory_space<vmem>>, vector<16x1024xf32>,
    return
  }
  func.func @transform_0(%arg0: i32) -> (i32, i32) {
    %c0_i32 = arith.constant 0 : i32
    %c0_i32_0 = arith.constant 0 : i32
    %c0_i32_1 = arith.constant 0 : i32
    return %c0_i32, %c0_i32_0 : i32, i32
  }
  func.func @transform_1(%arg0: i32) -> (i32, i32) {
    %c0_i32 = arith.constant 0 : i32
    %c0_i32_0 = arith.constant 0 : i32
    %c0_i32_1 = arith.constant 0 : i32
    return %c0_i32, %c0_i32_0 : i32, i32
  }
  func.func @transform_2(%arg0: i32) -> (i32, i32) {
    %c0_i32 = arith.constant 0 : i32
    %c0_i32_0 = arith.constant 0 : i32
    %c0_i32_1 = arith.constant 0 : i32
    return %c0_i32, %c0_i32_0 : i32, i32
  }
  func.func @transform_3(%arg0: i32) -> (i32, i32) {
    %c0_i32 = arith.constant 0 : i32
    %c0_i32_0 = arith.constant 0 : i32
    %c0_i32_1 = arith.constant 0 : i32
    return %c0_i32, %c0_i32_0 : i32, i32
  }
}

</mosaic_0001>

<llo_original>
// kernel: tpu_custom_call.1
$region0: #{tpu_custom_call.1}
  #allocation0 [shape = 'u32[]', space=smem, size = 0x4, offset = 0x4, fixed_abs, tag = 'smem constant byte address 0x4 - core index']
  #allocation1 [shape = 'u32[144,128]{1,0:T(1,128)}', space=vmem, size = 0x12000, scoped, tag = 'internal scratch']
  %s0 = inlined_call_operand.hbm [shape: bf16[16,256], index: 0, kind: input, shape index: {}]
  %s1 = inlined_call_operand.hbm [shape: bf16[256,1024], index: 1, kind: input, shape index: {}]
  %s2 = inlined_call_operand.hbm [shape: f32[1,1024], index: 2, kind: input, shape index: {}]
  %s3 = inlined_call_operand.hbm [shape: f32[16,1024], index: 3, kind: output, shape index: {}]
  %s4 = sld [smem:[#allocation0]]
  $region34: #{tpu_custom_call.1} parent=0
    _
  %s6 = ssub.s32 1, %s4
  %s7 = scalar_select 0, %s6, %s4
  $region1: #{tpu_custom_call.1} parent=0
    #allocation2 [shape = 'u8[8192]{0}', space=vmem, size = 0x2000, scoped, tag = 'input window, operand 0, single buffered']
    #allocation3 [shape = 's32[1]{0}', space=sflag, size = 0x4, scoped, tag = 'scoped memory for tpu_custom_call.1']
    #allocation4 [shape = 's32[1]{0}', space=sflag, size = 0x4, scoped, tag = 'scoped memory for tpu_custom_call.1']
    #allocation5 [shape = 'u8[524288]{0}', space=vmem, size = 0x80000, scoped, tag = 'input window, operand 1, single buffered']
    #allocation6 [shape = 's32[1]{0}', space=sflag, size = 0x4, scoped, tag = 'scoped memory for tpu_custom_call.1']
    #allocation7 [shape = 'u8[4096]{0}', space=vmem, size = 0x1000, scoped, tag = 'input window, operand 2, single buffered']
    #allocation8 [shape = 'u8[65536]{0}', space=vmem, size = 0x10000, scoped, tag = 'output window, operand 0, single buffered']
    %8 = vsyncpa [#allocation3], 0
    %9 = vsyncpa [#allocation6], 0
    %10 = vsyncpa [#allocation4], 0
    // Predicated region
    $region2: #{tpu_custom_call.1} parent=1 // pred_check
      _
    $region3: #{tpu_custom_call.1} parent=1 // pred_check_branch
      %12 = sbr.rel (0) target = $region5
    $region4: #{tpu_custom_call.1} parent=1 // pred_region
      %s14 = ssub.s32 256, 256
      %15 = vsyncadd [#allocation3], %s14
      %s16 = sshll.u32 [#allocation2], 4
      %s17 = int_to_ptr.vmem [resolvable:$true] %s16
      %22 = dma.hbm_to_vmem [thread:$0]  %s0, 256, %s17, [#allocation3], 128, 128, 8
    $region5: #{tpu_custom_call.1} parent=1 // pred_fallthru
      _
    // Predicated region
    $region6: #{tpu_custom_call.1} parent=1 // pred_check
      _
    $region7: #{tpu_custom_call.1} parent=1 // pred_check_branch
      %24 = sbr.rel (0) target = $region9
    $region8: #{tpu_custom_call.1} parent=1 // pred_region
      %s26 = ssub.s32 16384, 16384
      %27 = vsyncadd [#allocation6], %s26
      %s28 = sshll.u32 [#allocation5], 4
      %s29 = int_to_ptr.vmem [resolvable:$true] %s28
      %34 = dma.hbm_to_vmem [thread:$0]  %s1, 16384, %s29, [#allocation6], 512, 512, 32
    $region9: #{tpu_custom_call.1} parent=1 // pred_fallthru
      _
    // Predicated region
    $region10: #{tpu_custom_call.1} parent=1 // pred_check
      _
    $region11: #{tpu_custom_call.1} parent=1 // pred_check_branch
      %36 = sbr.rel (0) target = $region13
    $region12: #{tpu_custom_call.1} parent=1 // pred_region
      %s38 = ssub.s32 128, 128
      %39 = vsyncadd [#allocation6], %s38
      %s41 = sshll.u32 [#allocation7], 4
      %s42 = int_to_ptr.vmem [resolvable:$true] %s41
      %44 = dma.hbm_to_vmem [thread:$0]  %s2, 128, %s42, [#allocation6]
    $region13: #{tpu_custom_call.1} parent=1 // pred_fallthru
      _
    // Predicated region
    $region14: #{tpu_custom_call.1} parent=1 // pred_check
      _
    $region15: #{tpu_custom_call.1} parent=1 // pred_check_branch
      %46 = sbr.rel (0) target = $region17
    $region16: #{tpu_custom_call.1} parent=1 // pred_region
      %47 = dma.done [#allocation3], 256
    $region17: #{tpu_custom_call.1} parent=1 // pred_fallthru
      _
    // Predicated region
    $region18: #{tpu_custom_call.1} parent=1 // pred_check
      _
    $region19: #{tpu_custom_call.1} parent=1 // pred_check_branch
      %49 = sbr.rel (0) target = $region21
    $region20: #{tpu_custom_call.1} parent=1 // pred_region
      %50 = dma.done [#allocation6], 16384
    $region21: #{tpu_custom_call.1} parent=1 // pred_fallthru
      _
    // Predicated region
    $region22: #{tpu_custom_call.1} parent=1 // pred_check
      _
    $region23: #{tpu_custom_call.1} parent=1 // pred_check_branch
      %52 = sbr.rel (0) target = $region25
    $region24: #{tpu_custom_call.1} parent=1 // pred_region
      %53 = dma.done [#allocation6], 128
    $region25: #{tpu_custom_call.1} parent=1 // pred_fallthru
      _
    %v54 = vld [vmem:[#allocation2] sm:$0xff]
    %v55 = vld [vmem:[#allocation2 + $0x8] sm:$0xff]
    %v56 = vld [vmem:[#allocation5] sm:$0xff]
    %v57 = vld [vmem:[#allocation5 + $0x8] sm:$0xff]
    %v58 = vld [vmem:[#allocation5 + $0x10] sm:$0xff]
    %v59 = vld [vmem:[#allocation5 + $0x18] sm:$0xff]
    %v60 = vld [vmem:[#allocation5 + $0x20] sm:$0xff]
    %v61 = vld [vmem:[#allocation5 + $0x28] sm:$0xff]
    %v62 = vld [vmem:[#allocation5 + $0x30] sm:$0xff]
    %v63 = vld [vmem:[#allocation5 + $0x38] sm:$0xff]
    %v64 = vld [vmem:[#allocation5 + $0x40] sm:$0xff]
    %v65 = vld [vmem:[#allocation5 + $0x48] sm:$0xff]
    %v66 = vld [vmem:[#allocation5 + $0x50] sm:$0xff]
    %v67 = vld [vmem:[#allocation5 + $0x58] sm:$0xff]
    %v68 = vld [vmem:[#allocation5 + $0x60] sm:$0xff]
    %v69 = vld [vmem:[#allocation5 + $0x68] sm:$0xff]
    %v70 = vld [vmem:[#allocation5 + $0x70] sm:$0xff]
    %v71 = vld [vmem:[#allocation5 + $0x78] sm:$0xff]
    %v72 = vld [vmem:[#allocation5 + $0x80] sm:$0xff]
    %v73 = vld [vmem:[#allocation5 + $0x88] sm:$0xff]
    %v74 = vld [vmem:[#allocation5 + $0x90] sm:$0xff]
    %v75 = vld [vmem:[#allocation5 + $0x98] sm:$0xff]
    %v76 = vld [vmem:[#allocation5 + $0xa0] sm:$0xff]
    %v77 = vld [vmem:[#allocation5 + $0xa8] sm:$0xff]
    %v78 = vld [vmem:[#allocation5 + $0xb0] sm:$0xff]
    %v79 = vld [vmem:[#allocation5 + $0xb8] sm:$0xff]
    %v80 = vld [vmem:[#allocation5 + $0xc0] sm:$0xff]
    %v81 = vld [vmem:[#allocation5 + $0xc8] sm:$0xff]
    %v82 = vld [vmem:[#allocation5 + $0xd0] sm:$0xff]
    %v83 = vld [vmem:[#allocation5 + $0xd8] sm:$0xff]
    %v84 = vld [vmem:[#allocation5 + $0xe0] sm:$0xff]
    %v85 = vld [vmem:[#allocation5 + $0xe8] sm:$0xff]
    %v86 = vld [vmem:[#allocation5 + $0xf0] sm:$0xff]
    %v87 = vld [vmem:[#allocation5 + $0xf8] sm:$0xff]
    %v88 = vld [vmem:[#allocation5 + $0x100] sm:$0xff]
    %v89 = vld [vmem:[#allocation5 + $0x108] sm:$0xff]
    %v90 = vld [vmem:[#allocation5 + $0x110] sm:$0xff]
    %v91 = vld [vmem:[#allocation5 + $0x118] sm:$0xff]
    %v92 = vld [vmem:[#allocation5 + $0x120] sm:$0xff]
    %v93 = vld [vmem:[#allocation5 + $0x128] sm:$0xff]
    %v94 = vld [vmem:[#allocation5 + $0x130] sm:$0xff]
    %v95 = vld [vmem:[#allocation5 + $0x138] sm:$0xff]
    %v96 = vld [vmem:[#allocation5 + $0x140] sm:$0xff]
    %v97 = vld [vmem:[#allocation5 + $0x148] sm:$0xff]
    %v98 = vld [vmem:[#allocation5 + $0x150] sm:$0xff]
    %v99 = vld [vmem:[#allocation5 + $0x158] sm:$0xff]
    %v100 = vld [vmem:[#allocation5 + $0x160] sm:$0xff]
    %v101 = vld [vmem:[#allocation5 + $0x168] sm:$0xff]
    %v102 = vld [vmem:[#allocation5 + $0x170] sm:$0xff]
    %v103 = vld [vmem:[#allocation5 + $0x178] sm:$0xff]
    %v104 = vld [vmem:[#allocation5 + $0x180] sm:$0xff]
    %v105 = vld [vmem:[#allocation5 + $0x188] sm:$0xff]
    %v106 = vld [vmem:[#allocation5 + $0x190] sm:$0xff]
    %v107 = vld [vmem:[#allocation5 + $0x198] sm:$0xff]
    %v108 = vld [vmem:[#allocation5 + $0x1a0] sm:$0xff]
    %v109 = vld [vmem:[#allocation5 + $0x1a8] sm:$0xff]
    %v110 = vld [vmem:[#allocation5 + $0x1b0] sm:$0xff]
    %v111 = vld [vmem:[#allocation5 + $0x1b8] sm:$0xff]
    %v112 = vld [vmem:[#allocation5 + $0x1c0] sm:$0xff]
    %v113 = vld [vmem:[#allocation5 + $0x1c8] sm:$0xff]
    %v114 = vld [vmem:[#allocation5 + $0x1d0] sm:$0xff]
    %v115 = vld [vmem:[#allocation5 + $0x1d8] sm:$0xff]
    %v116 = vld [vmem:[#allocation5 + $0x1e0] sm:$0xff]
    %v117 = vld [vmem:[#allocation5 + $0x1e8] sm:$0xff]
    %v118 = vld [vmem:[#allocation5 + $0x1f0] sm:$0xff]
    %v119 = vld [vmem:[#allocation5 + $0x1f8] sm:$0xff]
    %v120 = vld [vmem:[#allocation5 + $0x200] sm:$0xff]
    %v121 = vld [vmem:[#allocation5 + $0x208] sm:$0xff]
    %v122 = vld [vmem:[#allocation5 + $0x210] sm:$0xff]
    %v123 = vld [vmem:[#allocation5 + $0x218] sm:$0xff]
    %v124 = vld [vmem:[#allocation5 + $0x220] sm:$0xff]
    %v125 = vld [vmem:[#allocation5 + $0x228] sm:$0xff]
    %v126 = vld [vmem:[#allocation5 + $0x230] sm:$0xff]
    %v127 = vld [vmem:[#allocation5 + $0x238] sm:$0xff]
    %v128 = vld [vmem:[#allocation5 + $0x240] sm:$0xff]
    %v129 = vld [vmem:[#allocation5 + $0x248] sm:$0xff]
    %v130 = vld [vmem:[#allocation5 + $0x250] sm:$0xff]
    %v131 = vld [vmem:[#allocation5 + $0x258] sm:$0xff]
    %v132 = vld [vmem:[#allocation5 + $0x260] sm:$0xff]
    %v133 = vld [vmem:[#allocation5 + $0x268] sm:$0xff]
    %v134 = vld [vmem:[#allocation5 + $0x270] sm:$0xff]
    %v135 = vld [vmem:[#allocation5 + $0x278] sm:$0xff]
    %v136 = vld [vmem:[#allocation5 + $0x280] sm:$0xff]
    %v137 = vld [vmem:[#allocation5 + $0x288] sm:$0xff]
    %v138 = vld [vmem:[#allocation5 + $0x290] sm:$0xff]
    %v139 = vld [vmem:[#allocation5 + $0x298] sm:$0xff]
    %v140 = vld [vmem:[#allocation5 + $0x2a0] sm:$0xff]
    %v141 = vld [vmem:[#allocation5 + $0x2a8] sm:$0xff]
    %v142 = vld [vmem:[#allocation5 + $0x2b0] sm:$0xff]
    %v143 = vld [vmem:[#allocation5 + $0x2b8] sm:$0xff]
    %v144 = vld [vmem:[#allocation5 + $0x2c0] sm:$0xff]
    %v145 = vld [vmem:[#allocation5 + $0x2c8] sm:$0xff]
    %v146 = vld [vmem:[#allocation5 + $0x2d0] sm:$0xff]
    %v147 = vld [vmem:[#allocation5 + $0x2d8] sm:$0xff]
    %v148 = vld [vmem:[#allocation5 + $0x2e0] sm:$0xff]
    %v149 = vld [vmem:[#allocation5 + $0x2e8] sm:$0xff]
    %v150 = vld [vmem:[#allocation5 + $0x2f0] sm:$0xff]
    %v151 = vld [vmem:[#allocation5 + $0x2f8] sm:$0xff]
    %v152 = vld [vmem:[#allocation5 + $0x300] sm:$0xff]
    %v153 = vld [vmem:[#allocation5 + $0x308] sm:$0xff]
    %v154 = vld [vmem:[#allocation5 + $0x310] sm:$0xff]
    %v155 = vld [vmem:[#allocation5 + $0x318] sm:$0xff]
    %v156 = vld [vmem:[#allocation5 + $0x320] sm:$0xff]
    %v157 = vld [vmem:[#allocation5 + $0x328] sm:$0xff]
    %v158 = vld [vmem:[#allocation5 + $0x330] sm:$0xff]
    %v159 = vld [vmem:[#allocation5 + $0x338] sm:$0xff]
    %v160 = vld [vmem:[#allocation5 + $0x340] sm:$0xff]
    %v161 = vld [vmem:[#allocation5 + $0x348] sm:$0xff]
    %v162 = vld [vmem:[#allocation5 + $0x350] sm:$0xff]
    %v163 = vld [vmem:[#allocation5 + $0x358] sm:$0xff]
    %v164 = vld [vmem:[#allocation5 + $0x360] sm:$0xff]
    %v165 = vld [vmem:[#allocation5 + $0x368] sm:$0xff]
    %v166 = vld [vmem:[#allocation5 + $0x370] sm:$0xff]
    %v167 = vld [vmem:[#allocation5 + $0x378] sm:$0xff]
    %v168 = vld [vmem:[#allocation5 + $0x380] sm:$0xff]
    %v169 = vld [vmem:[#allocation5 + $0x388] sm:$0xff]
    %v170 = vld [vmem:[#allocation5 + $0x390] sm:$0xff]
    %v171 = vld [vmem:[#allocation5 + $0x398] sm:$0xff]
    %v172 = vld [vmem:[#allocation5 + $0x3a0] sm:$0xff]
    %v173 = vld [vmem:[#allocation5 + $0x3a8] sm:$0xff]
    %v174 = vld [vmem:[#allocation5 + $0x3b0] sm:$0xff]
    %v175 = vld [vmem:[#allocation5 + $0x3b8] sm:$0xff]
    %v176 = vld [vmem:[#allocation5 + $0x3c0] sm:$0xff]
    %v177 = vld [vmem:[#allocation5 + $0x3c8] sm:$0xff]
    %v178 = vld [vmem:[#allocation5 + $0x3d0] sm:$0xff]
    %v179 = vld [vmem:[#allocation5 + $0x3d8] sm:$0xff]
    %v180 = vld [vmem:[#allocation5 + $0x3e0] sm:$0xff]
    %v181 = vld [vmem:[#allocation5 + $0x3e8] sm:$0xff]
    %v182 = vld [vmem:[#allocation5 + $0x3f0] sm:$0xff]
    %v183 = vld [vmem:[#allocation5 + $0x3f8] sm:$0xff]
    %v184 = vld [vmem:[#allocation7] sm:$0xff]
    %v186 = vlaneseq
    %v187 = vshrl.u32 %v186, 7
    %v188 = vsub.s32 0, %v187
    %v189 = vrot.slane %v184, %v188
    %v190 = vlaneseq
    %v191 = vshrl.u32 %v190, 7
    %v192 = vsub.s32 1, %v191
    %v193 = vrot.slane %v184, %v192
    %v194 = vlaneseq
    %v195 = vshrl.u32 %v194, 7
    %v196 = vsub.s32 2, %v195
    %v197 = vrot.slane %v184, %v196
    %v198 = vlaneseq
    %v199 = vshrl.u32 %v198, 7
    %v200 = vsub.s32 3, %v199
    %v201 = vrot.slane %v184, %v200
    %v202 = vlaneseq
    %v203 = vshrl.u32 %v202, 7
    %v204 = vsub.s32 4, %v203
    %v205 = vrot.slane %v184, %v204
    %v206 = vlaneseq
    %v207 = vshrl.u32 %v206, 7
    %v208 = vsub.s32 5, %v207
    %v209 = vrot.slane %v184, %v208
    %v210 = vlaneseq
    %v211 = vshrl.u32 %v210, 7
    %v212 = vsub.s32 6, %v211
    %v213 = vrot.slane %v184, %v212
    %v214 = vlaneseq
    %v215 = vshrl.u32 %v214, 7
    %v216 = vsub.s32 7, %v215
    %v217 = vrot.slane %v184, %v216
    %v228 = vunpack.c.l.b16 %v54
    %v229 = vunpack.c.h.b16 %v54
    %v230 = vunpack.c.l.b16 %v55
    %v231 = vunpack.c.h.b16 %v55
    %v232 = vpack.c.b16 %v230, %v228
    %v233 = vpack.c.b16 %v231, %v229
    %v364 = vunpack.c.l.b16 %v56
    %v365 = vunpack.c.h.b16 %v56
    %v366 = vunpack.c.l.b16 %v57
    %v367 = vunpack.c.h.b16 %v57
    %v368 = vunpack.c.l.b16 %v58
    %v369 = vunpack.c.h.b16 %v58
    %v370 = vunpack.c.l.b16 %v59
    %v371 = vunpack.c.h.b16 %v59
    %v372 = vunpack.c.l.b16 %v60
    %v373 = vunpack.c.h.b16 %v60
    %v374 = vunpack.c.l.b16 %v61
    %v375 = vunpack.c.h.b16 %v61
    %v376 = vunpack.c.l.b16 %v62
    %v377 = vunpack.c.h.b16 %v62
    %v378 = vunpack.c.l.b16 %v63
    %v379 = vunpack.c.h.b16 %v63
    %v380 = vunpack.c.l.b16 %v64
    %v381 = vunpack.c.h.b16 %v64
    %v382 = vunpack.c.l.b16 %v65
    %v383 = vunpack.c.h.b16 %v65
    %v384 = vunpack.c.l.b16 %v66
    %v385 = vunpack.c.h.b16 %v66
    %v386 = vunpack.c.l.b16 %v67
    %v387 = vunpack.c.h.b16 %v67
    %v388 = vunpack.c.l.b16 %v68
    %v389 = vunpack.c.h.b16 %v68
    %v390 = vunpack.c.l.b16 %v69
    %v391 = vunpack.c.h.b16 %v69
    %v392 = vunpack.c.l.b16 %v70
    %v393 = vunpack.c.h.b16 %v70
    %v394 = vunpack.c.l.b16 %v71
    %v395 = vunpack.c.h.b16 %v71
    %v396 = vunpack.c.l.b16 %v72
    %v397 = vunpack.c.h.b16 %v72
    %v398 = vunpack.c.l.b16 %v73
    %v399 = vunpack.c.h.b16 %v73
    %v400 = vunpack.c.l.b16 %v74
    %v401 = vunpack.c.h.b16 %v74
    %v402 = vunpack.c.l.b16 %v75
    %v403 = vunpack.c.h.b16 %v75
    %v404 = vunpack.c.l.b16 %v76
    %v405 = vunpack.c.h.b16 %v76
    %v406 = vunpack.c.l.b16 %v77
    %v407 = vunpack.c.h.b16 %v77
    %v408 = vunpack.c.l.b16 %v78
    %v409 = vunpack.c.h.b16 %v78
    %v410 = vunpack.c.l.b16 %v79
    %v411 = vunpack.c.h.b16 %v79
    %v412 = vunpack.c.l.b16 %v80
    %v413 = vunpack.c.h.b16 %v80
    %v414 = vunpack.c.l.b16 %v81
    %v415 = vunpack.c.h.b16 %v81
    %v416 = vunpack.c.l.b16 %v82
    %v417 = vunpack.c.h.b16 %v82
    %v418 = vunpack.c.l.b16 %v83
    %v419 = vunpack.c.h.b16 %v83
    %v420 = vunpack.c.l.b16 %v84
    %v421 = vunpack.c.h.b16 %v84
    %v422 = vunpack.c.l.b16 %v85
    %v423 = vunpack.c.h.b16 %v85
    %v424 = vunpack.c.l.b16 %v86
    %v425 = vunpack.c.h.b16 %v86
    %v426 = vunpack.c.l.b16 %v87
    %v427 = vunpack.c.h.b16 %v87
    %v428 = vunpack.c.l.b16 %v88
    %v429 = vunpack.c.h.b16 %v88
    %v430 = vunpack.c.l.b16 %v89
    %v431 = vunpack.c.h.b16 %v89
    %v432 = vunpack.c.l.b16 %v90
    %v433 = vunpack.c.h.b16 %v90
    %v434 = vunpack.c.l.b16 %v91
    %v435 = vunpack.c.h.b16 %v91
    %v436 = vunpack.c.l.b16 %v92
    %v437 = vunpack.c.h.b16 %v92
    %v438 = vunpack.c.l.b16 %v93
    %v439 = vunpack.c.h.b16 %v93
    %v440 = vunpack.c.l.b16 %v94
    %v441 = vunpack.c.h.b16 %v94
    %v442 = vunpack.c.l.b16 %v95
    %v443 = vunpack.c.h.b16 %v95
    %v444 = vunpack.c.l.b16 %v96
    %v445 = vunpack.c.h.b16 %v96
    %v446 = vunpack.c.l.b16 %v97
    %v447 = vunpack.c.h.b16 %v97
    %v448 = vunpack.c.l.b16 %v98
    %v449 = vunpack.c.h.b16 %v98
    %v450 = vunpack.c.l.b16 %v99
    %v451 = vunpack.c.h.b16 %v99
    %v452 = vunpack.c.l.b16 %v100
    %v453 = vunpack.c.h.b16 %v100
    %v454 = vunpack.c.l.b16 %v101
    %v455 = vunpack.c.h.b16 %v101
    %v456 = vunpack.c.l.b16 %v102
    %v457 = vunpack.c.h.b16 %v102
    %v458 = vunpack.c.l.b16 %v103
    %v459 = vunpack.c.h.b16 %v103
    %v460 = vunpack.c.l.b16 %v104
    %v461 = vunpack.c.h.b16 %v104
    %v462 = vunpack.c.l.b16 %v105
    %v463 = vunpack.c.h.b16 %v105
    %v464 = vunpack.c.l.b16 %v106
    %v465 = vunpack.c.h.b16 %v106
    %v466 = vunpack.c.l.b16 %v107
    %v467 = vunpack.c.h.b16 %v107
    %v468 = vunpack.c.l.b16 %v108
    %v469 = vunpack.c.h.b16 %v108
    %v470 = vunpack.c.l.b16 %v109
    %v471 = vunpack.c.h.b16 %v109
    %v472 = vunpack.c.l.b16 %v110
    %v473 = vunpack.c.h.b16 %v110
    %v474 = vunpack.c.l.b16 %v111
    %v475 = vunpack.c.h.b16 %v111
    %v476 = vunpack.c.l.b16 %v112
    %v477 = vunpack.c.h.b16 %v112
    %v478 = vunpack.c.l.b16 %v113
    %v479 = vunpack.c.h.b16 %v113
    %v480 = vunpack.c.l.b16 %v114
    %v481 = vunpack.c.h.b16 %v114
    %v482 = vunpack.c.l.b16 %v115
    %v483 = vunpack.c.h.b16 %v115
    %v484 = vunpack.c.l.b16 %v116
    %v485 = vunpack.c.h.b16 %v116
    %v486 = vunpack.c.l.b16 %v117
    %v487 = vunpack.c.h.b16 %v117
    %v488 = vunpack.c.l.b16 %v118
    %v489 = vunpack.c.h.b16 %v118
    %v490 = vunpack.c.l.b16 %v119
    %v491 = vunpack.c.h.b16 %v119
    %v492 = vunpack.c.l.b16 %v120
    %v493 = vunpack.c.h.b16 %v120
    %v494 = vunpack.c.l.b16 %v121
    %v495 = vunpack.c.h.b16 %v121
    %v496 = vunpack.c.l.b16 %v122
    %v497 = vunpack.c.h.b16 %v122
    %v498 = vunpack.c.l.b16 %v123
    %v499 = vunpack.c.h.b16 %v123
    %v500 = vunpack.c.l.b16 %v124
    %v501 = vunpack.c.h.b16 %v124
    %v502 = vunpack.c.l.b16 %v125
    %v503 = vunpack.c.h.b16 %v125
    %v504 = vunpack.c.l.b16 %v126
    %v505 = vunpack.c.h.b16 %v126
    %v506 = vunpack.c.l.b16 %v127
    %v507 = vunpack.c.h.b16 %v127
    %v508 = vunpack.c.l.b16 %v128
    %v509 = vunpack.c.h.b16 %v128
    %v510 = vunpack.c.l.b16 %v129
    %v511 = vunpack.c.h.b16 %v129
    %v512 = vunpack.c.l.b16 %v130
    %v513 = vunpack.c.h.b16 %v130
    %v514 = vunpack.c.l.b16 %v131
    %v515 = vunpack.c.h.b16 %v131
    %v516 = vunpack.c.l.b16 %v132
    %v517 = vunpack.c.h.b16 %v132
    %v518 = vunpack.c.l.b16 %v133
    %v519 = vunpack.c.h.b16 %v133
    %v520 = vunpack.c.l.b16 %v134
    %v521 = vunpack.c.h.b16 %v134
    %v522 = vunpack.c.l.b16 %v135
    %v523 = vunpack.c.h.b16 %v135
    %v524 = vunpack.c.l.b16 %v136
    %v525 = vunpack.c.h.b16 %v136
    %v526 = vunpack.c.l.b16 %v137
    %v527 = vunpack.c.h.b16 %v137
    %v528 = vunpack.c.l.b16 %v138
    %v529 = vunpack.c.h.b16 %v138
    %v530 = vunpack.c.l.b16 %v139
    %v531 = vunpack.c.h.b16 %v139
    %v532 = vunpack.c.l.b16 %v140
    %v533 = vunpack.c.h.b16 %v140
    %v534 = vunpack.c.l.b16 %v141
    %v535 = vunpack.c.h.b16 %v141
    %v536 = vunpack.c.l.b16 %v142
    %v537 = vunpack.c.h.b16 %v142
    %v538 = vunpack.c.l.b16 %v143
    %v539 = vunpack.c.h.b16 %v143
    %v540 = vunpack.c.l.b16 %v144
    %v541 = vunpack.c.h.b16 %v144
    %v542 = vunpack.c.l.b16 %v145
    %v543 = vunpack.c.h.b16 %v145
    %v544 = vunpack.c.l.b16 %v146
    %v545 = vunpack.c.h.b16 %v146
    %v546 = vunpack.c.l.b16 %v147
    %v547 = vunpack.c.h.b16 %v147
    %v548 = vunpack.c.l.b16 %v148
    %v549 = vunpack.c.h.b16 %v148
    %v550 = vunpack.c.l.b16 %v149
    %v551 = vunpack.c.h.b16 %v149
    %v552 = vunpack.c.l.b16 %v150
    %v553 = vunpack.c.h.b16 %v150
    %v554 = vunpack.c.l.b16 %v151
    %v555 = vunpack.c.h.b16 %v151
    %v556 = vunpack.c.l.b16 %v152
    %v557 = vunpack.c.h.b16 %v152
    %v558 = vunpack.c.l.b16 %v153
    %v559 = vunpack.c.h.b16 %v153
    %v560 = vunpack.c.l.b16 %v154
    %v561 = vunpack.c.h.b16 %v154
    %v562 = vunpack.c.l.b16 %v155
    %v563 = vunpack.c.h.b16 %v155
    %v564 = vunpack.c.l.b16 %v156
    %v565 = vunpack.c.h.b16 %v156
    %v566 = vunpack.c.l.b16 %v157
    %v567 = vunpack.c.h.b16 %v157
    %v568 = vunpack.c.l.b16 %v158
    %v569 = vunpack.c.h.b16 %v158
    %v570 = vunpack.c.l.b16 %v159
    %v571 = vunpack.c.h.b16 %v159
    %v572 = vunpack.c.l.b16 %v160
    %v573 = vunpack.c.h.b16 %v160
    %v574 = vunpack.c.l.b16 %v161
    %v575 = vunpack.c.h.b16 %v161
    %v576 = vunpack.c.l.b16 %v162
    %v577 = vunpack.c.h.b16 %v162
    %v578 = vunpack.c.l.b16 %v163
    %v579 = vunpack.c.h.b16 %v163
    %v580 = vunpack.c.l.b16 %v164
    %v581 = vunpack.c.h.b16 %v164
    %v582 = vunpack.c.l.b16 %v165
    %v583 = vunpack.c.h.b16 %v165
    %v584 = vunpack.c.l.b16 %v166
    %v585 = vunpack.c.h.b16 %v166
    %v586 = vunpack.c.l.b16 %v167
    %v587 = vunpack.c.h.b16 %v167
    %v588 = vunpack.c.l.b16 %v168
    %v589 = vunpack.c.h.b16 %v168
    %v590 = vunpack.c.l.b16 %v169
    %v591 = vunpack.c.h.b16 %v169
    %v592 = vunpack.c.l.b16 %v170
    %v593 = vunpack.c.h.b16 %v170
    %v594 = vunpack.c.l.b16 %v171
    %v595 = vunpack.c.h.b16 %v171
    %v596 = vunpack.c.l.b16 %v172
    %v597 = vunpack.c.h.b16 %v172
    %v598 = vunpack.c.l.b16 %v173
    %v599 = vunpack.c.h.b16 %v173
    %v600 = vunpack.c.l.b16 %v174
    %v601 = vunpack.c.h.b16 %v174
    %v602 = vunpack.c.l.b16 %v175
    %v603 = vunpack.c.h.b16 %v175
    %v604 = vunpack.c.l.b16 %v176
    %v605 = vunpack.c.h.b16 %v176
    %v606 = vunpack.c.l.b16 %v177
    %v607 = vunpack.c.h.b16 %v177
    %v608 = vunpack.c.l.b16 %v178
    %v609 = vunpack.c.h.b16 %v178
    %v610 = vunpack.c.l.b16 %v179
    %v611 = vunpack.c.h.b16 %v179
    %v612 = vunpack.c.l.b16 %v180
    %v613 = vunpack.c.h.b16 %v180
    %v614 = vunpack.c.l.b16 %v181
    %v615 = vunpack.c.h.b16 %v181
    %v616 = vunpack.c.l.b16 %v182
    %v617 = vunpack.c.h.b16 %v182
    %v618 = vunpack.c.l.b16 %v183
    %v619 = vunpack.c.h.b16 %v183
    %v620 = vpack.c.b16 %v372, %v364
    %v621 = vpack.c.b16 %v373, %v365
    %v622 = vpack.c.b16 %v374, %v366
    %v623 = vpack.c.b16 %v375, %v367
    %v624 = vpack.c.b16 %v376, %v368
    %v625 = vpack.c.b16 %v377, %v369
    %v626 = vpack.c.b16 %v378, %v370
    %v627 = vpack.c.b16 %v379, %v371
    %v628 = vpack.c.b16 %v388, %v380
    %v629 = vpack.c.b16 %v389, %v381
    %v630 = vpack.c.b16 %v390, %v382
    %v631 = vpack.c.b16 %v391, %v383
    %v632 = vpack.c.b16 %v392, %v384
    %v633 = vpack.c.b16 %v393, %v385
    %v634 = vpack.c.b16 %v394, %v386
    %v635 = vpack.c.b16 %v395, %v387
    %v636 = vpack.c.b16 %v404, %v396
    %v637 = vpack.c.b16 %v405, %v397
    %v638 = vpack.c.b16 %v406, %v398
    %v639 = vpack.c.b16 %v407, %v399
    %v640 = vpack.c.b16 %v408, %v400
    %v641 = vpack.c.b16 %v409, %v401
    %v642 = vpack.c.b16 %v410, %v402
    %v643 = vpack.c.b16 %v411, %v403
    %v644 = vpack.c.b16 %v420, %v412
    %v645 = vpack.c.b16 %v421, %v413
    %v646 = vpack.c.b16 %v422, %v414
    %v647 = vpack.c.b16 %v423, %v415
    %v648 = vpack.c.b16 %v424, %v416
    %v649 = vpack.c.b16 %v425, %v417
    %v650 = vpack.c.b16 %v426, %v418
    %v651 = vpack.c.b16 %v427, %v419
    %v652 = vpack.c.b16 %v436, %v428
    %v653 = vpack.c.b16 %v437, %v429
    %v654 = vpack.c.b16 %v438, %v430
    %v655 = vpack.c.b16 %v439, %v431
    %v656 = vpack.c.b16 %v440, %v432
    %v657 = vpack.c.b16 %v441, %v433
    %v658 = vpack.c.b16 %v442, %v434
    %v659 = vpack.c.b16 %v443, %v435
    %v660 = vpack.c.b16 %v452, %v444
    %v661 = vpack.c.b16 %v453, %v445
    %v662 = vpack.c.b16 %v454, %v446
    %v663 = vpack.c.b16 %v455, %v447
    %v664 = vpack.c.b16 %v456, %v448
    %v665 = vpack.c.b16 %v457, %v449
    %v666 = vpack.c.b16 %v458, %v450
    %v667 = vpack.c.b16 %v459, %v451
    %v668 = vpack.c.b16 %v468, %v460
    %v669 = vpack.c.b16 %v469, %v461
    %v670 = vpack.c.b16 %v470, %v462
    %v671 = vpack.c.b16 %v471, %v463
    %v672 = vpack.c.b16 %v472, %v464
    %v673 = vpack.c.b16 %v473, %v465
    %v674 = vpack.c.b16 %v474, %v466
    %v675 = vpack.c.b16 %v475, %v467
    %v676 = vpack.c.b16 %v484, %v476
    %v677 = vpack.c.b16 %v485, %v477
    %v678 = vpack.c.b16 %v486, %v478
    %v679 = vpack.c.b16 %v487, %v479
    %v680 = vpack.c.b16 %v488, %v480
    %v681 = vpack.c.b16 %v489, %v481
    %v682 = vpack.c.b16 %v490, %v482
    %v683 = vpack.c.b16 %v491, %v483
    %v684 = vpack.c.b16 %v500, %v492
    %v685 = vpack.c.b16 %v501, %v493
    %v686 = vpack.c.b16 %v502, %v494
    %v687 = vpack.c.b16 %v503, %v495
    %v688 = vpack.c.b16 %v504, %v496
    %v689 = vpack.c.b16 %v505, %v497
    %v690 = vpack.c.b16 %v506, %v498
    %v691 = vpack.c.b16 %v507, %v499
    %v692 = vpack.c.b16 %v516, %v508
    %v693 = vpack.c.b16 %v517, %v509
    %v694 = vpack.c.b16 %v518, %v510
    %v695 = vpack.c.b16 %v519, %v511
    %v696 = vpack.c.b16 %v520, %v512
    %v697 = vpack.c.b16 %v521, %v513
    %v698 = vpack.c.b16 %v522, %v514
    %v699 = vpack.c.b16 %v523, %v515
    %v700 = vpack.c.b16 %v532, %v524
    %v701 = vpack.c.b16 %v533, %v525
    %v702 = vpack.c.b16 %v534, %v526
    %v703 = vpack.c.b16 %v535, %v527
    %v704 = vpack.c.b16 %v536, %v528
    %v705 = vpack.c.b16 %v537, %v529
    %v706 = vpack.c.b16 %v538, %v530
    %v707 = vpack.c.b16 %v539, %v531
    %v708 = vpack.c.b16 %v548, %v540
    %v709 = vpack.c.b16 %v549, %v541
    %v710 = vpack.c.b16 %v550, %v542
    %v711 = vpack.c.b16 %v551, %v543
    %v712 = vpack.c.b16 %v552, %v544
    %v713 = vpack.c.b16 %v553, %v545
    %v714 = vpack.c.b16 %v554, %v546
    %v715 = vpack.c.b16 %v555, %v547
    %v716 = vpack.c.b16 %v564, %v556
    %v717 = vpack.c.b16 %v565, %v557
    %v718 = vpack.c.b16 %v566, %v558
    %v719 = vpack.c.b16 %v567, %v559
    %v720 = vpack.c.b16 %v568, %v560
    %v721 = vpack.c.b16 %v569, %v561
    %v722 = vpack.c.b16 %v570, %v562
    %v723 = vpack.c.b16 %v571, %v563
    %v724 = vpack.c.b16 %v580, %v572
    %v725 = vpack.c.b16 %v581, %v573
    %v726 = vpack.c.b16 %v582, %v574
    %v727 = vpack.c.b16 %v583, %v575
    %v728 = vpack.c.b16 %v584, %v576
    %v729 = vpack.c.b16 %v585, %v577
    %v730 = vpack.c.b16 %v586, %v578
    %v731 = vpack.c.b16 %v587, %v579
    %v732 = vpack.c.b16 %v596, %v588
    %v733 = vpack.c.b16 %v597, %v589
    %v734 = vpack.c.b16 %v598, %v590
    %v735 = vpack.c.b16 %v599, %v591
    %v736 = vpack.c.b16 %v600, %v592
    %v737 = vpack.c.b16 %v601, %v593
    %v738 = vpack.c.b16 %v602, %v594
    %v739 = vpack.c.b16 %v603, %v595
    %v740 = vpack.c.b16 %v612, %v604
    %v741 = vpack.c.b16 %v613, %v605
    %v742 = vpack.c.b16 %v614, %v606
    %v743 = vpack.c.b16 %v615, %v607
    %v744 = vpack.c.b16 %v616, %v608
    %v745 = vpack.c.b16 %v617, %v609
    %v746 = vpack.c.b16 %v618, %v610
    %v747 = vpack.c.b16 %v619, %v611
    %876 = vmatprep.subr.bf16.mxu0 %v621
    %877 = vmatpush1.bf16.msra.mxu0 %v620
    %878 = vmatprep.subr.bf16.mxu0 %v629
    %879 = vmatpush1.bf16.msra.mxu0 %v628
    %880 = vmatprep.subr.bf16.mxu0 %v637
    %881 = vmatpush1.bf16.msra.mxu0 %v636
    %882 = vmatprep.subr.bf16.mxu0 %v645
    %883 = vmatpush1.bf16.msra.mxu0 %v644
    %884 = vmatprep.subr.bf16.mxu0 %v653
    %885 = vmatpush1.bf16.msra.mxu0 %v652
    %886 = vmatprep.subr.bf16.mxu0 %v661
    %887 = vmatpush1.bf16.msra.mxu0 %v660
    %888 = vmatprep.subr.bf16.mxu0 %v669
    %889 = vmatpush1.bf16.msra.mxu0 %v668
    %890 = vmatprep.subr.bf16.mxu0 %v677
    %891 = vmatpush1.bf16.msra.mxu0 %v676
    %892 = vmatprep.subr.bf16.mxu0 %v685
    %893 = vmatpush1.bf16.msra.mxu0 %v684
    %894 = vmatprep.subr.bf16.mxu0 %v693
    %895 = vmatpush1.bf16.msra.mxu0 %v692
    %896 = vmatprep.subr.bf16.mxu0 %v701
    %897 = vmatpush1.bf16.msra.mxu0 %v700
    %898 = vmatprep.subr.bf16.mxu0 %v709
    %899 = vmatpush1.bf16.msra.mxu0 %v708
    %900 = vmatprep.subr.bf16.mxu0 %v717
    %901 = vmatpush1.bf16.msra.mxu0 %v716
    %902 = vmatprep.subr.bf16.mxu0 %v725
    %903 = vmatpush1.bf16.msra.mxu0 %v724
    %904 = vmatprep.subr.bf16.mxu0 %v733
    %905 = vmatpush1.bf16.msra.mxu0 %v732
    %906 = vmatprep.subr.bf16.mxu0 %v741
    %907 = vmatpush1.bf16.msra.mxu0 %v740
    %908 = vmatprep.mubr.bf16.mxu0 %v233
    %909 = vmatmul.mubr.bf16.gmra.mrb[0].mxu0 %v232
    %v910 = vpop.f32.mrb[0].mxu0
    %v911 = vadd.f32 %v189, %v910
    %v912 = vpop.f32.mrb[0].mxu0
    %v913 = vadd.f32 %v193, %v912
    %v914 = vpop.f32.mrb[0].mxu0
    %v915 = vadd.f32 %v189, %v914
    %v916 = vpop.f32.mrb[0].mxu0
    %v917 = vadd.f32 %v193, %v916
    %918 = vdwg.mxu0
    %919 = vmatprep.subr.bf16.mxu0 %v623
    %920 = vmatpush1.bf16.msra.mxu0 %v622
    %921 = vmatprep.subr.bf16.mxu0 %v631
    %922 = vmatpush1.bf16.msra.mxu0 %v630
    %923 = vmatprep.subr.bf16.mxu0 %v639
    %924 = vmatpush1.bf16.msra.mxu0 %v638
    %925 = vmatprep.subr.bf16.mxu0 %v647
    %926 = vmatpush1.bf16.msra.mxu0 %v646
    %927 = vmatprep.subr.bf16.mxu0 %v655
    %928 = vmatpush1.bf16.msra.mxu0 %v654
    %929 = vmatprep.subr.bf16.mxu0 %v663
    %930 = vmatpush1.bf16.msra.mxu0 %v662
    %931 = vmatprep.subr.bf16.mxu0 %v671
    %932 = vmatpush1.bf16.msra.mxu0 %v670
    %933 = vmatprep.subr.bf16.mxu0 %v679
    %934 = vmatpush1.bf16.msra.mxu0 %v678
    %935 = vmatprep.subr.bf16.mxu0 %v687
    %936 = vmatpush1.bf16.msra.mxu0 %v686
    %937 = vmatprep.subr.bf16.mxu0 %v695
    %938 = vmatpush1.bf16.msra.mxu0 %v694
    %939 = vmatprep.subr.bf16.mxu0 %v703
    %940 = vmatpush1.bf16.msra.mxu0 %v702
    %941 = vmatprep.subr.bf16.mxu0 %v711
    %942 = vmatpush1.bf16.msra.mxu0 %v710
    %943 = vmatprep.subr.bf16.mxu0 %v719
    %944 = vmatpush1.bf16.msra.mxu0 %v718
    %945 = vmatprep.subr.bf16.mxu0 %v727
    %946 = vmatpush1.bf16.msra.mxu0 %v726
    %947 = vmatprep.subr.bf16.mxu0 %v735
    %948 = vmatpush1.bf16.msra.mxu0 %v734
    %949 = vmatprep.subr.bf16.mxu0 %v743
    %950 = vmatpush1.bf16.msra.mxu0 %v742
    %951 = vmatprep.mubr.bf16.mxu0 %v233
    %952 = vmatmul.mubr.bf16.gmra.mrb[0].mxu0 %v232
    %v953 = vpop.f32.mrb[0].mxu0
    %v954 = vadd.f32 %v197, %v953
    %v955 = vpop.f32.mrb[0].mxu0
    %v956 = vadd.f32 %v201, %v955
    %v957 = vpop.f32.mrb[0].mxu0
    %v958 = vadd.f32 %v197, %v957
    %v959 = vpop.f32.mrb[0].mxu0
    %v960 = vadd.f32 %v201, %v959
    %961 = vdwg.mxu0
    %962 = vmatprep.subr.bf16.mxu0 %v625
    %963 = vmatpush1.bf16.msra.mxu0 %v624
    %964 = vmatprep.subr.bf16.mxu0 %v633
    %965 = vmatpush1.bf16.msra.mxu0 %v632
    %966 = vmatprep.subr.bf16.mxu0 %v641
    %967 = vmatpush1.bf16.msra.mxu0 %v640
    %968 = vmatprep.subr.bf16.mxu0 %v649
    %969 = vmatpush1.bf16.msra.mxu0 %v648
    %970 = vmatprep.subr.bf16.mxu0 %v657
    %971 = vmatpush1.bf16.msra.mxu0 %v656
    %972 = vmatprep.subr.bf16.mxu0 %v665
    %973 = vmatpush1.bf16.msra.mxu0 %v664
    %974 = vmatprep.subr.bf16.mxu0 %v673
    %975 = vmatpush1.bf16.msra.mxu0 %v672
    %976 = vmatprep.subr.bf16.mxu0 %v681
    %977 = vmatpush1.bf16.msra.mxu0 %v680
    %978 = vmatprep.subr.bf16.mxu0 %v689
    %979 = vmatpush1.bf16.msra.mxu0 %v688
    %980 = vmatprep.subr.bf16.mxu0 %v697
    %981 = vmatpush1.bf16.msra.mxu0 %v696
    %982 = vmatprep.subr.bf16.mxu0 %v705
    %983 = vmatpush1.bf16.msra.mxu0 %v704
    %984 = vmatprep.subr.bf16.mxu0 %v713
    %985 = vmatpush1.bf16.msra.mxu0 %v712
    %986 = vmatprep.subr.bf16.mxu0 %v721
    %987 = vmatpush1.bf16.msra.mxu0 %v720
    %988 = vmatprep.subr.bf16.mxu0 %v729
    %989 = vmatpush1.bf16.msra.mxu0 %v728
    %990 = vmatprep.subr.bf16.mxu0 %v737
    %991 = vmatpush1.bf16.msra.mxu0 %v736
    %992 = vmatprep.subr.bf16.mxu0 %v745
    %993 = vmatpush1.bf16.msra.mxu0 %v744
    %994 = vmatprep.mubr.bf16.mxu0 %v233
    %995 = vmatmul.mubr.bf16.gmra.mrb[0].mxu0 %v232
    %v996 = vpop.f32.mrb[0].mxu0
    %v997 = vadd.f32 %v205, %v996
    %v998 = vpop.f32.mrb[0].mxu0
    %v999 = vadd.f32 %v209, %v998
    %v1000 = vpop.f32.mrb[0].mxu0
    %v1001 = vadd.f32 %v205, %v1000
    %v1002 = vpop.f32.mrb[0].mxu0
    %v1003 = vadd.f32 %v209, %v1002
    %1004 = vdwg.mxu0
    %1005 = vmatprep.subr.bf16.mxu0 %v627
    %1006 = vmatpush1.bf16.msra.mxu0 %v626
    %1007 = vmatprep.subr.bf16.mxu0 %v635
    %1008 = vmatpush1.bf16.msra.mxu0 %v634
    %1009 = vmatprep.subr.bf16.mxu0 %v643
    %1010 = vmatpush1.bf16.msra.mxu0 %v642
    %1011 = vmatprep.subr.bf16.mxu0 %v651
    %1012 = vmatpush1.bf16.msra.mxu0 %v650
    %1013 = vmatprep.subr.bf16.mxu0 %v659
    %1014 = vmatpush1.bf16.msra.mxu0 %v658
    %1015 = vmatprep.subr.bf16.mxu0 %v667
    %1016 = vmatpush1.bf16.msra.mxu0 %v666
    %1017 = vmatprep.subr.bf16.mxu0 %v675
    %1018 = vmatpush1.bf16.msra.mxu0 %v674
    %1019 = vmatprep.subr.bf16.mxu0 %v683
    %1020 = vmatpush1.bf16.msra.mxu0 %v682
    %1021 = vmatprep.subr.bf16.mxu0 %v691
    %1022 = vmatpush1.bf16.msra.mxu0 %v690
    %1023 = vmatprep.subr.bf16.mxu0 %v699
    %1024 = vmatpush1.bf16.msra.mxu0 %v698
    %1025 = vmatprep.subr.bf16.mxu0 %v707
    %1026 = vmatpush1.bf16.msra.mxu0 %v706
    %1027 = vmatprep.subr.bf16.mxu0 %v715
    %1028 = vmatpush1.bf16.msra.mxu0 %v714
    %1029 = vmatprep.subr.bf16.mxu0 %v723
    %1030 = vmatpush1.bf16.msra.mxu0 %v722
    %1031 = vmatprep.subr.bf16.mxu0 %v731
    %1032 = vmatpush1.bf16.msra.mxu0 %v730
    %1033 = vmatprep.subr.bf16.mxu0 %v739
    %1034 = vmatpush1.bf16.msra.mxu0 %v738
    %1035 = vmatprep.subr.bf16.mxu0 %v747
    %1036 = vmatpush1.bf16.msra.mxu0 %v746
    %1037 = vmatprep.mubr.bf16.mxu0 %v233
    %1038 = vmatmul.mubr.bf16.gmra.mrb[0].mxu0 %v232
    %v1039 = vpop.f32.mrb[0].mxu0
    %v1040 = vadd.f32 %v213, %v1039
    %v1041 = vpop.f32.mrb[0].mxu0
    %v1042 = vadd.f32 %v217, %v1041
    %v1043 = vpop.f32.mrb[0].mxu0
    %v1044 = vadd.f32 %v213, %v1043
    %v1045 = vpop.f32.mrb[0].mxu0
    %v1046 = vadd.f32 %v217, %v1045
    %1047 = vdwg.mxu0
    %1048 = vst [vmem:[#allocation8] sm:$0xff] %v911
    %1049 = vst [vmem:[#allocation8 + $0x8] sm:$0xff] %v913
    %1050 = vst [vmem:[#allocation8 + $0x10] sm:$0xff] %v954
    %1051 = vst [vmem:[#allocation8 + $0x18] sm:$0xff] %v956
    %1052 = vst [vmem:[#allocation8 + $0x20] sm:$0xff] %v997
    %1053 = vst [vmem:[#allocation8 + $0x28] sm:$0xff] %v999
    %1054 = vst [vmem:[#allocation8 + $0x30] sm:$0xff] %v1040
    %1055 = vst [vmem:[#allocation8 + $0x38] sm:$0xff] %v1042
    %1056 = vst [vmem:[#allocation8 + $0x40] sm:$0xff] %v915
    %1057 = vst [vmem:[#allocation8 + $0x48] sm:$0xff] %v917
    %1058 = vst [vmem:[#allocation8 + $0x50] sm:$0xff] %v958
    %1059 = vst [vmem:[#allocation8 + $0x58] sm:$0xff] %v960
    %1060 = vst [vmem:[#allocation8 + $0x60] sm:$0xff] %v1001
    %1061 = vst [vmem:[#allocation8 + $0x68] sm:$0xff] %v1003
    %1062 = vst [vmem:[#allocation8 + $0x70] sm:$0xff] %v1044
    %1063 = vst [vmem:[#allocation8 + $0x78] sm:$0xff] %v1046
    // Predicated region
    $region26: #{tpu_custom_call.1} parent=1 // pred_check
      _
    $region27: #{tpu_custom_call.1} parent=1 // pred_check_branch
      %1065 = sbr.rel (0) target = $region29
    $region28: #{tpu_custom_call.1} parent=1 // pred_region
      %s1067 = ssub.s32 2048, 2048
      %1068 = vsyncadd [#allocation4], %s1067
      %s1069 = sshll.u32 [#allocation8], 4
      %s1070 = int_to_ptr.vmem [resolvable:$true] %s1069
      %1075 = dma.vmem_to_hbm [thread:$0]  %s1070, 2048, %s3, [#allocation4], 1024, 1024, 64
    $region29: #{tpu_custom_call.1} parent=1 // pred_fallthru
      _
    // Predicated region
    $region30: #{tpu_custom_call.1} parent=1 // pred_check
      _
    $region31: #{tpu_custom_call.1} parent=1 // pred_check_branch
      %1077 = sbr.rel (0) target = $region33
    $region32: #{tpu_custom_call.1} parent=1 // pred_region
      %1078 = dma.done [#allocation4], 2048
    $region33: #{tpu_custom_call.1} parent=1 // pred_fallthru
      _
    %1079 = vsyncpa [#allocation3], 1
    %1080 = vsyncpa [#allocation6], 1
    %1081 = vsyncpa [#allocation4], 1

</llo_original>
